<compile_context>
chip_gen: v6e
topology: v6e:2x2x1
jax: 0.10.0
libtpu: 0.0.40
codegen_flags: <defaults>
</compile_context>

<pallas_src>
import jax
import jax.numpy as jnp
from jax.experimental import pallas as pl
from jax.experimental.pallas import tpu as pltpu


def _round_up(x, m):
    return ((x + m - 1) // m) * m


def _lane_tile(n):
    for nt in (512, 256, 128):
        if n >= nt:
            return nt
    return 128


def _global_pos_loss_kernel(w_ref, pred_ref, targ_ref, out_ref):
    # w_ref:    (S_out_pad, S_pad)  cumsum / banded-window weights (grid-invariant)
    # pred_ref: (S_pad, Nt)         time in sublanes, batch*dims in lanes
    # targ_ref: (S_pad, Nt)
    # out_ref:  (8, Nt)             lane-wise partial sums of squared position error
    e = pred_ref[...] - targ_ref[...]                                   # (S_pad, Nt)
    pos_err = jnp.dot(w_ref[...], e, preferred_element_type=jnp.float32)  # (S_out_pad, Nt)
    sq = pos_err * pos_err
    g = sq.shape[0] // 8
    # Fold sublane groups of 8 together (pure VALU adds); cross-lane reduce is
    # deferred to the wrapper, paid once.
    out_ref[...] = jnp.sum(sq.reshape(g, 8, sq.shape[1]), axis=0)


def global_pos_loss(pred, targ, mode="full", history=None):
    """Pallas TPU implementation of GlobalPosLoss.forward."""
    assert mode in ("full", "part")
    if mode == "part":
        assert history is not None
    else:
        history = 1  # matches the torch module's default; unused in 'full'

    B, T, D = pred.shape
    S = T - 1
    assert S >= 1, "need at least 2 time steps"
    if mode == "part":
        assert 1 <= history < S, "mode='part' requires 1 <= history < T-1"
        s_out = S - history
    else:
        s_out = S
    n_elems = B * s_out * D

    # Layout plumbing: (B, T, D) -> drop first step -> (S, B*D), lane-dense.
    pred_2d = jnp.transpose(pred[:, 1:, :], (1, 0, 2)).reshape(S, B * D)
    targ_2d = jnp.transpose(targ[:, 1:, :], (1, 0, 2)).reshape(S, B * D)

    N = B * D
    nt = _lane_tile(N)
    n_pad = _round_up(N, nt)
    s_pad = _round_up(S, 8)
    s_out_pad = _round_up(s_out, 8)

    # Zero padding: padded lanes / time rows give e == 0, and padded output rows
    # are masked to zero inside W, so they contribute nothing to the sum.
    pred_2d = jnp.pad(pred_2d, ((0, s_pad - S), (0, n_pad - N)))
    targ_2d = jnp.pad(targ_2d, ((0, s_pad - S), (0, n_pad - N)))

    # Weight matrix: W @ e == cumsum(e) ('full') or windowed sum over the last
    # `history` steps ('part', i.e. pos[i+history] - pos[i]). Exact 0/1 values.
    row = jax.lax.broadcasted_iota(jnp.int32, (s_out_pad, s_pad), 0)
    col = jax.lax.broadcasted_iota(jnp.int32, (s_out_pad, s_pad), 1)
    if mode == "full":
        w = (col <= row) & (row < s_out)
    else:
        w = (row < col) & (col <= row + history) & (row < s_out)
    w = w.astype(pred_2d.dtype)

    num_tiles = n_pad // nt

    # VMEM budget estimate (raise the scoped limit only if needed; keep one
    # tiling valid across v5e/v6e/v7x).
    itemsize = jnp.dtype(pred_2d.dtype).itemsize
    vmem_est = (
        2 * s_out_pad * s_pad * itemsize      # W (possibly double-buffered)
        + 2 * 2 * s_pad * nt * itemsize       # 2 inputs x 2 buffers
        + 2 * 8 * nt * 4                      # output x 2 buffers
        + (1 << 20)                           # slack
    )
    cp_kwargs = dict(dimension_semantics=("parallel",))
    if vmem_est > (16 << 20):
        cp_kwargs["vmem_limit_bytes"] = int(min(max(vmem_est, 32 << 20), 64 << 20))

    partials = pl.pallas_call(
        _global_pos_loss_kernel,
        out_shape=jax.ShapeDtypeStruct((8, n_pad), jnp.float32),
        grid_spec=pltpu.PrefetchScalarGridSpec(
            num_scalar_prefetch=0,
            grid=(num_tiles,),
            in_specs=[
                pl.BlockSpec((s_out_pad, s_pad), lambda n: (0, 0)),  # W, grid-invariant
                pl.BlockSpec((s_pad, nt), lambda n: (0, n)),         # pred tile
                pl.BlockSpec((s_pad, nt), lambda n: (0, n)),         # targ tile
            ],
            out_specs=pl.BlockSpec((8, nt), lambda n: (0, n)),
        ),
        compiler_params=pltpu.CompilerParams(**cp_kwargs),
    )(w, pred_2d, targ_2d)

    # Single cross-lane reduction + mean, done once in the wrapper.
    return jnp.sum(partials) / jnp.float32(n_elems)


def _reference_loss(pred, targ, mode="full", history=None):
    """Pure-JAX reference mirroring the PyTorch forward."""
    if mode == "full":
        history = 1
    gt_pos = jnp.cumsum(targ[:, 1:], axis=1)
    pred_pos = jnp.cumsum(pred[:, 1:], axis=1)
    if mode == "part":
        gt_pos = gt_pos[:, history:, :] - gt_pos[:, :-history, :]
        pred_pos = pred_pos[:, history:, :] - pred_pos[:, :-history, :]
    return jnp.mean((pred_pos - gt_pos) ** 2)


if __name__ == "__main__":
    key = jax.random.PRNGKey(0)
    k1, k2 = jax.random.split(key)

    B, T, D = 2, 8, 3  # batch, sequence length, velocity dims
    pred = jax.random.normal(k1, (B, T, D), dtype=jnp.float32)
    targ = jax.random.normal(k2, (B, T, D), dtype=jnp.float32)

    # mode='full'
    loss_full = jax.block_until_ready(global_pos_loss(pred, targ, mode="full"))
    ref_full = _reference_loss(pred, targ, mode="full")
    assert jnp.allclose(loss_full, ref_full, rtol=1e-5, atol=1e-5), (loss_full, ref_full)

    # mode='part', history=2
    loss_part = jax.block_until_ready(global_pos_loss(pred, targ, mode="part", history=2))
    ref_part = _reference_loss(pred, targ, mode="part", history=2)
    assert jnp.allclose(loss_part, ref_part, rtol=1e-5, atol=1e-5), (loss_part, ref_part)

    print("KERNEL_OK")
</pallas_src>

<mosaic_0001>
module attributes {stable_mosaic.version = 11 : i64} {
  func.func @_global_pos_loss_kernel(%arg0: i32, %arg1: memref<8x8xf32, #tpu.memory_space<vmem>>, %arg2: memref<8x128xf32, #tpu.memory_space<vmem>>, %arg3: memref<8x128xf32, #tpu.memory_space<vmem>>, %arg4: memref<8x128xf32, #tpu.memory_space<vmem>>) attributes {dimension_semantics = [#tpu.dimension_semantics<parallel>], iteration_bounds = array<i64: 1>, scalar_prefetch = 0 : i64, scratch_operands = 0 : i64, tpu.core_type = #tpu.core_type<tc>, window_params = [{pipeline_mode = #tpu.pipeline_mode<synchronous>, transform_indices = @transform_0, window_bounds = array<i64: 8, 8>}, {transform_indices = @transform_1, window_bounds = array<i64: 8, 128>}, {transform_indices = @transform_2, window_bounds = array<i64: 8, 128>}, {transform_indices = @transform_3, window_bounds = array<i64: 8, 128>}]} {
    %c0 = arith.constant 0 : index
    %c0_0 = arith.constant 0 : index
    %0 = vector.load %arg2[%c0, %c0_0] : memref<8x128xf32, #tpu.memory_space<vmem>>, vector<8x128xf32>
    %c0_1 = arith.constant 0 : index
    %c0_2 = arith.constant 0 : index
    %1 = vector.load %arg3[%c0_1, %c0_2] : memref<8x128xf32, #tpu.memory_space<vmem>>, vector<8x128xf32>
    %2 = arith.subf %0, %1 : vector<8x128xf32>
    %c0_3 = arith.constant 0 : index
    %c0_4 = arith.constant 0 : index
    %3 = vector.load %arg1[%c0_3, %c0_4] : memref<8x8xf32, #tpu.memory_space<vmem>>, vector<8x8xf32>
    %cst = arith.constant dense<0.000000e+00> : vector<8x128xf32>
    %4 = tpu.matmul %3, %2, %cst {dimension_numbers = #tpu.dot_dimension_numbers<[1], [0], [0], [1], [0, 0, 1, 1], [], []>} : vector<8x8xf32>, vector<8x128xf32>, vector<8x128xf32> -> vector<8x128xf32>
    %5 = arith.mulf %4, %4 : vector<8x128xf32>
    %6 = vector.shape_cast %5 : vector<8x128xf32> to vector<1x8x128xf32>
    %cst_5 = arith.constant dense<0.000000e+00> : vector<8x128xf32>
    %7 = vector.multi_reduction <add>, %6, %cst_5 [0] : vector<1x8x128xf32> to vector<8x128xf32>
    %c0_6 = arith.constant 0 : index
    %c0_7 = arith.constant 0 : index
    %8 = vector.load %arg4[%c0_6, %c0_7] : memref<8x128xf32, #tpu.memory_space<vmem>>, vector<8x128xf32>
    tpu.vector_store %arg4[%c0_6, %c0_7], %7 {strides = array<i32>} : memref<8x128xf32, #tpu.memory_space<vmem>>, vector<8x128xf32>,
    return
  }
  func.func @transform_0(%arg0: i32) -> (i32, i32) {
    %c0_i32 = arith.constant 0 : i32
    %c0_i32_0 = arith.constant 0 : i32
    %c0_i32_1 = arith.constant 0 : i32
    return %c0_i32, %c0_i32_0 : i32, i32
  }
  func.func @transform_1(%arg0: i32) -> (i32, i32) {
    %c0_i32 = arith.constant 0 : i32
    %c0_i32_0 = arith.constant 0 : i32
    return %c0_i32, %arg0 : i32, i32
  }
  func.func @transform_2(%arg0: i32) -> (i32, i32) {
    %c0_i32 = arith.constant 0 : i32
    %c0_i32_0 = arith.constant 0 : i32
    return %c0_i32, %arg0 : i32, i32
  }
  func.func @transform_3(%arg0: i32) -> (i32, i32) {
    %c0_i32 = arith.constant 0 : i32
    %c0_i32_0 = arith.constant 0 : i32
    return %c0_i32, %arg0 : i32, i32
  }
}

</mosaic_0001>

<llo_original>
// kernel: tpu_custom_call.1
$region0: #{tpu_custom_call.1}
  #allocation0 [shape = 'u32[]', space=smem, size = 0x4, offset = 0x4, fixed_abs, tag = 'smem constant byte address 0x4 - core index']
  #allocation1 [shape = 'u32[144,128]{1,0:T(1,128)}', space=vmem, size = 0x12000, scoped, tag = 'internal scratch']
  %s0 = inlined_call_operand.hbm [shape: f32[8,8], index: 0, kind: input, shape index: {}]
  %s1 = inlined_call_operand.hbm [shape: f32[8,128], index: 1, kind: input, shape index: {}]
  %s2 = inlined_call_operand.hbm [shape: f32[8,128], index: 2, kind: input, shape index: {}]
  %s3 = inlined_call_operand.hbm [shape: f32[8,128], index: 3, kind: output, shape index: {}]
  %s4 = sld [smem:[#allocation0]]
  $region34: #{tpu_custom_call.1} parent=0
    _
  %s6 = ssub.s32 1, %s4
  %s7 = scalar_select 0, %s6, %s4
  $region1: #{tpu_custom_call.1} parent=0
    #allocation2 [shape = 'u8[4096]{0}', space=vmem, size = 0x1000, scoped, tag = 'input window, operand 0, single buffered']
    #allocation3 [shape = 's32[1]{0}', space=sflag, size = 0x4, scoped, tag = 'scoped memory for tpu_custom_call.1']
    #allocation4 [shape = 's32[1]{0}', space=sflag, size = 0x4, scoped, tag = 'scoped memory for tpu_custom_call.1']
    #allocation5 [shape = 'u8[4096]{0}', space=vmem, size = 0x1000, scoped, tag = 'input window, operand 1, single buffered']
    #allocation6 [shape = 's32[1]{0}', space=sflag, size = 0x4, scoped, tag = 'scoped memory for tpu_custom_call.1']
    #allocation7 [shape = 'u8[4096]{0}', space=vmem, size = 0x1000, scoped, tag = 'input window, operand 2, single buffered']
    #allocation8 [shape = 'u8[4096]{0}', space=vmem, size = 0x1000, scoped, tag = 'output window, operand 0, single buffered']
    %8 = vsyncpa [#allocation3], 0
    %9 = vsyncpa [#allocation6], 0
    %10 = vsyncpa [#allocation4], 0
    // Predicated region
    $region2: #{tpu_custom_call.1} parent=1 // pred_check
      _
    $region3: #{tpu_custom_call.1} parent=1 // pred_check_branch
      %12 = sbr.rel (0) target = $region5
    $region4: #{tpu_custom_call.1} parent=1 // pred_region
      %s14 = ssub.s32 128, 128
      %15 = vsyncadd [#allocation3], %s14
      %s17 = sshll.u32 [#allocation2], 4
      %s18 = int_to_ptr.vmem [resolvable:$true] %s17
      %20 = dma.hbm_to_vmem [thread:$0]  %s0, 128, %s18, [#allocation3]
    $region5: #{tpu_custom_call.1} parent=1 // pred_fallthru
      _
    // Predicated region
    $region6: #{tpu_custom_call.1} parent=1 // pred_check
      _
    $region7: #{tpu_custom_call.1} parent=1 // pred_check_branch
      %22 = sbr.rel (0) target = $region9
    $region8: #{tpu_custom_call.1} parent=1 // pred_region
      %s24 = ssub.s32 128, 128
      %25 = vsyncadd [#allocation6], %s24
      %s27 = sshll.u32 [#allocation5], 4
      %s28 = int_to_ptr.vmem [resolvable:$true] %s27
      %30 = dma.hbm_to_vmem [thread:$0]  %s1, 128, %s28, [#allocation6]
    $region9: #{tpu_custom_call.1} parent=1 // pred_fallthru
      _
    // Predicated region
    $region10: #{tpu_custom_call.1} parent=1 // pred_check
      _
    $region11: #{tpu_custom_call.1} parent=1 // pred_check_branch
      %32 = sbr.rel (0) target = $region13
    $region12: #{tpu_custom_call.1} parent=1 // pred_region
      %s34 = ssub.s32 128, 128
      %35 = vsyncadd [#allocation6], %s34
      %s37 = sshll.u32 [#allocation7], 4
      %s38 = int_to_ptr.vmem [resolvable:$true] %s37
      %40 = dma.hbm_to_vmem [thread:$0]  %s2, 128, %s38, [#allocation6]
    $region13: #{tpu_custom_call.1} parent=1 // pred_fallthru
      _
    // Predicated region
    $region14: #{tpu_custom_call.1} parent=1 // pred_check
      _
    $region15: #{tpu_custom_call.1} parent=1 // pred_check_branch
      %42 = sbr.rel (0) target = $region17
    $region16: #{tpu_custom_call.1} parent=1 // pred_region
      %43 = dma.done [#allocation3], 128
    $region17: #{tpu_custom_call.1} parent=1 // pred_fallthru
      _
    // Predicated region
    $region18: #{tpu_custom_call.1} parent=1 // pred_check
      _
    $region19: #{tpu_custom_call.1} parent=1 // pred_check_branch
      %45 = sbr.rel (0) target = $region21
    $region20: #{tpu_custom_call.1} parent=1 // pred_region
      %46 = dma.done [#allocation6], 128
    $region21: #{tpu_custom_call.1} parent=1 // pred_fallthru
      _
    // Predicated region
    $region22: #{tpu_custom_call.1} parent=1 // pred_check
      _
    $region23: #{tpu_custom_call.1} parent=1 // pred_check_branch
      %48 = sbr.rel (0) target = $region25
    $region24: #{tpu_custom_call.1} parent=1 // pred_region
      %49 = dma.done [#allocation6], 128
    $region25: #{tpu_custom_call.1} parent=1 // pred_fallthru
      _
    %v50 = vld [vmem:[#allocation5] sm:$0xff]
    %v51 = vld [vmem:[#allocation7] sm:$0xff]
    %v52 = vsub.f32 %v50, %v51
    %v53 = vld [vmem:[#allocation2] sm:$0xff]
    %vm54 = vcmask 64512
    %v56 = vsel %vm54, %v53, 0
    %58 = vmatprep.subr.mxu0 0.0
    %59 = vmatpush1.msra.mxu0 0.0
    %60 = vmatprep.subr.mxu0 0.0
    %61 = vmatpush1.msra.mxu0 0.0
    %62 = vmatprep.subr.mxu0 0.0
    %63 = vmatpush1.msra.mxu0 0.0
    %64 = vmatprep.subr.mxu0 0.0
    %65 = vmatpush1.msra.mxu0 0.0
    %66 = vmatprep.subr.mxu0 0.0
    %67 = vmatpush1.msra.mxu0 0.0
    %68 = vmatprep.subr.mxu0 0.0
    %69 = vmatpush1.msra.mxu0 0.0
    %70 = vmatprep.subr.mxu0 0.0
    %71 = vmatpush1.msra.mxu0 0.0
    %72 = vmatprep.subr.mxu0 0.0
    %73 = vmatpush1.msra.mxu0 0.0
    %74 = vmatprep.subr.mxu0 0.0
    %75 = vmatpush1.msra.mxu0 0.0
    %76 = vmatprep.subr.mxu0 0.0
    %77 = vmatpush1.msra.mxu0 0.0
    %78 = vmatprep.subr.mxu0 0.0
    %79 = vmatpush1.msra.mxu0 0.0
    %80 = vmatprep.subr.mxu0 0.0
    %81 = vmatpush1.msra.mxu0 0.0
    %82 = vmatprep.subr.mxu0 0.0
    %83 = vmatpush1.msra.mxu0 0.0
    %84 = vmatprep.subr.mxu0 0.0
    %85 = vmatpush1.msra.mxu0 0.0
    %86 = vmatprep.subr.mxu0 0.0
    %87 = vmatpush1.msra.mxu0 0.0
    %88 = vmatprep.subr.mxu0 0.0
    %89 = vmatpush1.msra.mxu0 %v52
    %90 = vmatprep.subr.mxu0 0.0
    %91 = vmatpush2.msra.mxu0 0.0
    %92 = vmatprep.subr.mxu0 0.0
    %93 = vmatpush2.msra.mxu0 0.0
    %94 = vmatprep.subr.mxu0 0.0
    %95 = vmatpush2.msra.mxu0 0.0
    %96 = vmatprep.subr.mxu0 0.0
    %97 = vmatpush2.msra.mxu0 0.0
    %98 = vmatprep.subr.mxu0 0.0
    %99 = vmatpush2.msra.mxu0 0.0
    %100 = vmatprep.subr.mxu0 0.0
    %101 = vmatpush2.msra.mxu0 0.0
    %102 = vmatprep.subr.mxu0 0.0
    %103 = vmatpush2.msra.mxu0 0.0
    %104 = vmatprep.subr.mxu0 0.0
    %105 = vmatpush2.msra.mxu0 0.0
    %106 = vmatprep.subr.mxu0 0.0
    %107 = vmatpush2.msra.mxu0 0.0
    %108 = vmatprep.subr.mxu0 0.0
    %109 = vmatpush2.msra.mxu0 0.0
    %110 = vmatprep.subr.mxu0 0.0
    %111 = vmatpush2.msra.mxu0 0.0
    %112 = vmatprep.subr.mxu0 0.0
    %113 = vmatpush2.msra.mxu0 0.0
    %114 = vmatprep.subr.mxu0 0.0
    %115 = vmatpush2.msra.mxu0 0.0
    %116 = vmatprep.subr.mxu0 0.0
    %117 = vmatpush2.msra.mxu0 0.0
    %118 = vmatprep.subr.mxu0 0.0
    %119 = vmatpush2.msra.mxu0 0.0
    %120 = vmatprep.subr.mxu0 0.0
    %121 = vmatpush2.msra.mxu0 0.0
    %122 = vmatprep.mubr.f32.mxu0 0.0
    %123 = vmatmul.mubr.f32.gmra.mxu0 %v56
    %v124 = vpop.f32.mrf.mxu0
    %v125 = vadd.f32 0.0, %v124
    %v126 = vpop.f32.mrf.mxu0
    %127 = vdwg.mxu0
    %v128 = vmul.f32 %v125, %v125
    %v129 = vadd.f32 %v128, 0.0
    %130 = vst [vmem:[#allocation8] sm:$0xff] %v129
    // Predicated region
    $region26: #{tpu_custom_call.1} parent=1 // pred_check
      _
    $region27: #{tpu_custom_call.1} parent=1 // pred_check_branch
      %132 = sbr.rel (0) target = $region29
    $region28: #{tpu_custom_call.1} parent=1 // pred_region
      %s134 = ssub.s32 128, 128
      %135 = vsyncadd [#allocation4], %s134
      %s137 = sshll.u32 [#allocation8], 4
      %s138 = int_to_ptr.vmem [resolvable:$true] %s137
      %140 = dma.vmem_to_hbm [thread:$0]  %s138, 128, %s3, [#allocation4]
    $region29: #{tpu_custom_call.1} parent=1 // pred_fallthru
      _
    // Predicated region
    $region30: #{tpu_custom_call.1} parent=1 // pred_check
      _
    $region31: #{tpu_custom_call.1} parent=1 // pred_check_branch
      %142 = sbr.rel (0) target = $region33
    $region32: #{tpu_custom_call.1} parent=1 // pred_region
      %143 = dma.done [#allocation4], 128
    $region33: #{tpu_custom_call.1} parent=1 // pred_fallthru
      _
    %144 = vsyncpa [#allocation3], 1
    %145 = vsyncpa [#allocation6], 1
    %146 = vsyncpa [#allocation4], 1

</llo_original>
